<compile_context>
chip_gen: v7x
topology: tpu7x:2x2x1
jax: 0.10.0
libtpu: 0.0.40
codegen_flags: <defaults>
</compile_context>

<pallas_src>
import jax
import jax.numpy as jnp
from jax.experimental import pallas as pl
from jax.experimental.pallas import tpu as pltpu

BN_EPS = 1e-5
LANE = 128


def _round_up(n, m):
    return ((n + m - 1) // m) * m


# ---------------------------------------------------------------------------
# Fused kernel: n_hidden x (Linear -> BN(batch stats) -> ReLU) + packed head.
#   x_ref  : (B, din)                    f32
#   w0_ref : (din, dmax)                 bf16  (first hidden layer, transposed)
#   ws_ref : (n_hidden, dmax, dmax)      bf16  (layers 1..n-1, slot n-1 = head)
#   vs_ref : (2*n_hidden+1, dmax)        f32   (rows 2l=gamma_l, 2l+1=beta_l,
#                                               last row = packed head bias)
#   o_ref  : (B, dmax)                   f32   (lane-dense packed head output)
# ---------------------------------------------------------------------------
def _make_fused_kernel(n_hidden):
    def kernel(x_ref, w0_ref, ws_ref, vs_ref, o_ref):
        h = x_ref[...]                                        # (B, din) f32
        for li in range(n_hidden):
            # Load each layer's weight inside its own iteration so each
            # 128x128 bf16 tile is live only for its layer (flat vreg use).
            w = w0_ref[...] if li == 0 else ws_ref[li - 1]
            # Linear on the MXU: bf16 operands, f32 accumulation. Linear bias
            # omitted -- it cancels inside batch-statistic BatchNorm.
            z = jnp.dot(h.astype(jnp.bfloat16), w,
                        preferred_element_type=jnp.float32)   # (B, dmax) f32
            # BatchNorm1d with batch statistics (biased variance), fused into
            # a per-feature scale/shift; one pass over z (sum + sum-of-squares).
            g = vs_ref[2 * li:2 * li + 1, :]                  # (1, dmax)
            b = vs_ref[2 * li + 1:2 * li + 2, :]              # (1, dmax)
            mean = jnp.mean(z, axis=0, keepdims=True)
            mean_sq = jnp.mean(z * z, axis=0, keepdims=True)
            var = jnp.maximum(mean_sq - mean * mean, 0.0)
            s = g * jax.lax.rsqrt(var + BN_EPS)               # gamma=0 on pad lanes
            t = b - mean * s
            # TODO(synk): nn.Dropout is stochastic at train time; identity (eval) here.
            h = jnp.maximum(z * s + t, 0.0)                   # BN + ReLU (default path)

        # Packed multi-task head: one lane-dense Linear for all tasks.
        bmt = vs_ref[2 * n_hidden:2 * n_hidden + 1, :]
        o_ref[...] = (
            jnp.dot(h.astype(jnp.bfloat16), ws_ref[n_hidden - 1],
                    preferred_element_type=jnp.float32)
            + bmt
        )

    return kernel


# ---------------------------------------------------------------------------
# Parameter construction (PyTorch-style (Dout, Din) weights, kaiming-normal)
# ---------------------------------------------------------------------------
def make_fcffn_params(key, input_dim, num_layers, layer_widths, multitask_outputs):
    widths = [input_dim] + layer_widths[:num_layers]
    hidden, mt = [], []
    for i in range(len(widths) - 1):
        key, kw, kb = jax.random.split(key, 3)
        fan_in = widths[i]
        w = jax.random.normal(kw, (widths[i + 1], widths[i]), jnp.float32) * jnp.sqrt(
            2.0 / fan_in)
        b = 0.1 * jax.random.normal(kb, (1, widths[i + 1]), jnp.float32)
        gamma = jnp.ones((1, widths[i + 1]), jnp.float32)
        beta = jnp.zeros((1, widths[i + 1]), jnp.float32)
        hidden.append((w, b, gamma, beta))
    last_w = widths[-1]
    for out_dim in multitask_outputs:
        key, kw, kb = jax.random.split(key, 3)
        w = jax.random.normal(kw, (out_dim, last_w), jnp.float32) * jnp.sqrt(
            2.0 / last_w)
        b = 0.1 * jax.random.normal(kb, (1, out_dim), jnp.float32)
        mt.append((w, b))
    return {"hidden": hidden, "mt": mt, "input_dim": input_dim}


# ---------------------------------------------------------------------------
# One-time host-side packing: transpose, pad feature dims to 128 lanes,
# bf16 weights, stack everything into 3 consolidated arrays (+ raw x).
# ---------------------------------------------------------------------------
def pack_fcffn_params(params):
    input_dim = params["input_dim"]
    hidden, mt = params["hidden"], params["mt"]
    n_hidden = len(hidden)
    widths = [input_dim] + [w.shape[0] for (w, _, _, _) in hidden]
    out_dims = [w.shape[0] for (w, _) in mt]
    out_total = sum(out_dims)
    dmax = _round_up(max(widths[1:] + [out_total]), LANE)   # lane-dense width

    # First hidden layer weight: (din, dmax) -- din stays unpadded so x can be
    # passed raw and a large SNP input dim never inflates the stacked slots.
    w0 = jnp.zeros((input_dim, dmax), jnp.float32)
    w0 = w0.at[:, :widths[1]].set(hidden[0][0].T).astype(jnp.bfloat16)

    # Stacked weights: slots 0..n_hidden-2 = hidden layers 1..n_hidden-1,
    # slot n_hidden-1 = all multi-task heads concatenated (lane-dense).
    wstack = jnp.zeros((n_hidden, dmax, dmax), jnp.float32)
    for li in range(1, n_hidden):
        w = hidden[li][0]
        dout, din = w.shape
        wstack = wstack.at[li - 1, :din, :dout].set(w.T)
    off = 0
    last_w = widths[-1]
    for (w, _b) in mt:
        od = w.shape[0]
        wstack = wstack.at[n_hidden - 1, :last_w, off:off + od].set(w.T)
        off += od
    wstack = wstack.astype(jnp.bfloat16)

    # Stacked (1, dmax) vectors: gamma/beta per layer + packed head bias.
    # Zero padding on unused lanes keeps padded features exactly zero
    # (scale s = gamma * rsqrt(eps) = 0 there).
    vstack = jnp.zeros((2 * n_hidden + 1, dmax), jnp.float32)
    for li, (_w, _b, gamma, beta) in enumerate(hidden):
        dout = gamma.shape[1]
        vstack = vstack.at[2 * li, :dout].set(gamma[0])
        vstack = vstack.at[2 * li + 1, :dout].set(beta[0])
    off = 0
    for (_w, b) in mt:
        od = b.shape[1]
        vstack = vstack.at[2 * n_hidden, off:off + od].set(b[0])
        off += od

    return {
        "w0": w0, "wstack": wstack, "vstack": vstack,
        "out_dims": out_dims, "din": input_dim, "widths": widths,
        "out_total": out_total, "dmax": dmax, "n_hidden": n_hidden,
    }


# ---------------------------------------------------------------------------
# Forward: one grid-less pallas_call for the whole network.
# NOTE: batch-statistic BN keeps the whole batch resident; if eval-mode
# running stats were acceptable, BN could be folded into the weights and a
# 'parallel' batch grid axis added (v7x dual-TC / large-B pipelining).
# ---------------------------------------------------------------------------
def fcffn_forward(packed, x):
    if x.shape[0] <= 1:
        raise ValueError("Batch Dimension should be > 1.")
    B, din = x.shape
    assert din == packed["din"]
    n_hidden, dmax = packed["n_hidden"], packed["dmax"]
    widths, out_total = packed["widths"], packed["out_total"]

    # Advisory cost estimate with TRUE (unpadded) dims.
    flops = 2 * B * sum(widths[i] * widths[i + 1] for i in range(n_hidden))
    flops += 2 * B * widths[-1] * out_total
    transcendentals = sum(widths[1:])                       # one rsqrt per feature
    bytes_accessed = (
        B * din * 4                                          # x
        + sum(widths[i] * widths[i + 1] for i in range(n_hidden)) * 2   # bf16 weights
        + widths[-1] * out_total * 2                          # bf16 head
        + sum(widths[1:]) * 2 * 4 + out_total * 4             # gamma/beta/bias
        + B * out_total * 4                                    # output
    )

    vmem_spec = pl.BlockSpec(memory_space=pltpu.MemorySpace.VMEM)
    out = pl.pallas_call(
        _make_fused_kernel(n_hidden),
        out_shape=jax.ShapeDtypeStruct((B, dmax), jnp.float32),
        in_specs=[vmem_spec, vmem_spec, vmem_spec, vmem_spec],
        out_specs=vmem_spec,
        cost_estimate=pl.CostEstimate(
            flops=int(flops), transcendentals=int(transcendentals),
            bytes_accessed=int(bytes_accessed)),
    )(x, packed["w0"], packed["wstack"], packed["vstack"])

    # ageInclusion=False -> no ageBatch concat. Slice the packed head per task.
    outs, off = [], 0
    for od in packed["out_dims"]:
        outs.append(out[:, off:off + od])
        off += od
    return outs


# ---------------------------------------------------------------------------
# Reference (pure JAX, same bf16-matmul / f32-accumulate numerics, WITH the
# hidden-layer Linear bias and two-pass BN stats, to validate the kernel).
# ---------------------------------------------------------------------------
def fcffn_reference(params, x):
    h = x
    for (w, b, gamma, beta) in params["hidden"]:
        z = jnp.dot(h.astype(jnp.bfloat16), w.T.astype(jnp.bfloat16),
                    preferred_element_type=jnp.float32) + b
        mean = jnp.mean(z, axis=0, keepdims=True)
        var = jnp.mean((z - mean) ** 2, axis=0, keepdims=True)
        z = gamma * (z - mean) * jax.lax.rsqrt(var + BN_EPS) + beta
        h = jnp.maximum(z, 0.0)
    return [
        jnp.dot(h.astype(jnp.bfloat16), w.T.astype(jnp.bfloat16),
                preferred_element_type=jnp.float32) + b
        for (w, b) in params["mt"]
    ]


# ---------------------------------------------------------------------------
if __name__ == "__main__":
    key = jax.random.PRNGKey(0)
    key, kx, kp = jax.random.split(key, 3)

    batch = 8                 # > 1 (BatchNorm1d requirement); NOT padded (exact stats)
    input_dim = 32
    num_layers = 2
    layer_widths = [64, 32]
    multitask_outputs = [1, 1]

    x = jax.random.normal(kx, (batch, input_dim), jnp.float32)
    params = make_fcffn_params(kp, input_dim, num_layers, layer_widths, multitask_outputs)
    packed = pack_fcffn_params(params)

    outs = fcffn_forward(packed, x)
    outs = [jax.block_until_ready(o) for o in outs]

    refs = fcffn_reference(params, x)
    for o, r in zip(outs, refs):
        assert o.shape == r.shape, (o.shape, r.shape)
        assert jnp.allclose(o, r, atol=2e-2, rtol=2e-2), "mismatch vs reference"

    print("KERNEL_OK")
</pallas_src>

<mosaic_0001>
module attributes {stable_mosaic.version = 11 : i64} {
  func.func @kernel(%arg0: memref<8x32xf32, #tpu.memory_space<vmem>>, %arg1: memref<32x128xbf16, #tpu.memory_space<vmem>>, %arg2: memref<2x128x128xbf16, #tpu.memory_space<vmem>>, %arg3: memref<5x128xf32, #tpu.memory_space<vmem>>, %arg4: memref<8x128xf32, #tpu.memory_space<vmem>>) attributes {dimension_semantics = [], scalar_prefetch = 0 : i64, scratch_operands = 0 : i64, tpu.core_type = #tpu.core_type<tc>} {
    %c0 = arith.constant 0 : index
    %c0_0 = arith.constant 0 : index
    %0 = vector.load %arg0[%c0, %c0_0] : memref<8x32xf32, #tpu.memory_space<vmem>>, vector<8x32xf32>
    %c0_1 = arith.constant 0 : index
    %c0_2 = arith.constant 0 : index
    %1 = vector.load %arg1[%c0_1, %c0_2] : memref<32x128xbf16, #tpu.memory_space<vmem>>, vector<32x128xbf16>
    %2 = arith.truncf %0 : vector<8x32xf32> to vector<8x32xbf16>
    %cst = arith.constant dense<0.000000e+00> : vector<8x128xf32>
    %3 = tpu.matmul %2, %1, %cst {dimension_numbers = #tpu.dot_dimension_numbers<[1], [0], [0], [1], [0, 0, 1, 1], [], []>} : vector<8x32xbf16>, vector<32x128xbf16>, vector<8x128xf32> -> vector<8x128xf32>
    %c0_3 = arith.constant 0 : index
    %c0_4 = arith.constant 0 : index
    %4 = vector.load %arg3[%c0_3, %c0_4] : memref<5x128xf32, #tpu.memory_space<vmem>>, vector<1x128xf32>
    %c1 = arith.constant 1 : index
    %c0_5 = arith.constant 0 : index
    %5 = vector.load %arg3[%c1, %c0_5] : memref<5x128xf32, #tpu.memory_space<vmem>>, vector<1x128xf32>
    %cst_6 = arith.constant dense<0.000000e+00> : vector<128xf32>
    %6 = vector.multi_reduction <add>, %3, %cst_6 [0] : vector<8x128xf32> to vector<128xf32>
    %7 = vector.shape_cast %6 : vector<128xf32> to vector<1x128xf32>
    %cst_7 = arith.constant 8.000000e+00 : f32
    %8 = vector.broadcast %cst_7 : f32 to vector<1x128xf32>
    %9 = arith.divf %7, %8 : vector<1x128xf32>
    %10 = arith.mulf %3, %3 : vector<8x128xf32>
    %cst_8 = arith.constant dense<0.000000e+00> : vector<128xf32>
    %11 = vector.multi_reduction <add>, %10, %cst_8 [0] : vector<8x128xf32> to vector<128xf32>
    %12 = vector.shape_cast %11 : vector<128xf32> to vector<1x128xf32>
    %cst_9 = arith.constant 8.000000e+00 : f32
    %13 = vector.broadcast %cst_9 : f32 to vector<1x128xf32>
    %14 = arith.divf %12, %13 : vector<1x128xf32>
    %15 = arith.mulf %9, %9 : vector<1x128xf32>
    %16 = arith.subf %14, %15 : vector<1x128xf32>
    %cst_10 = arith.constant 0.000000e+00 : f32
    %17 = vector.broadcast %cst_10 : f32 to vector<1x128xf32>
    %18 = arith.maximumf %16, %17 : vector<1x128xf32>
    %cst_11 = arith.constant 9.99999974E-6 : f32
    %19 = vector.broadcast %cst_11 : f32 to vector<1x128xf32>
    %20 = arith.addf %18, %19 : vector<1x128xf32>
    %21 = math.rsqrt %20 : vector<1x128xf32>
    %22 = arith.mulf %4, %21 : vector<1x128xf32>
    %23 = arith.mulf %9, %22 : vector<1x128xf32>
    %24 = arith.subf %5, %23 : vector<1x128xf32>
    %25 = vector.broadcast %22 : vector<1x128xf32> to vector<8x128xf32>
    %26 = arith.mulf %3, %25 : vector<8x128xf32>
    %27 = vector.broadcast %24 : vector<1x128xf32> to vector<8x128xf32>
    %28 = arith.addf %26, %27 : vector<8x128xf32>
    %cst_12 = arith.constant 0.000000e+00 : f32
    %29 = vector.broadcast %cst_12 : f32 to vector<8x128xf32>
    %30 = arith.maximumf %28, %29 : vector<8x128xf32>
    %c0_13 = arith.constant 0 : index
    %c0_14 = arith.constant 0 : index
    %c0_15 = arith.constant 0 : index
    %31 = vector.load %arg2[%c0_13, %c0_14, %c0_15] : memref<2x128x128xbf16, #tpu.memory_space<vmem>>, vector<1x128x128xbf16>
    %32 = vector.shape_cast %31 : vector<1x128x128xbf16> to vector<128x128xbf16>
    %33 = arith.truncf %30 : vector<8x128xf32> to vector<8x128xbf16>
    %cst_16 = arith.constant dense<0.000000e+00> : vector<8x128xf32>
    %34 = tpu.matmul %33, %32, %cst_16 {dimension_numbers = #tpu.dot_dimension_numbers<[1], [0], [0], [1], [0, 0, 1, 1], [], []>} : vector<8x128xbf16>, vector<128x128xbf16>, vector<8x128xf32> -> vector<8x128xf32>
    %c2 = arith.constant 2 : index
    %c0_17 = arith.constant 0 : index
    %35 = vector.load %arg3[%c2, %c0_17] : memref<5x128xf32, #tpu.memory_space<vmem>>, vector<1x128xf32>
    %c3 = arith.constant 3 : index
    %c0_18 = arith.constant 0 : index
    %36 = vector.load %arg3[%c3, %c0_18] : memref<5x128xf32, #tpu.memory_space<vmem>>, vector<1x128xf32>
    %cst_19 = arith.constant dense<0.000000e+00> : vector<128xf32>
    %37 = vector.multi_reduction <add>, %34, %cst_19 [0] : vector<8x128xf32> to vector<128xf32>
    %38 = vector.shape_cast %37 : vector<128xf32> to vector<1x128xf32>
    %cst_20 = arith.constant 8.000000e+00 : f32
    %39 = vector.broadcast %cst_20 : f32 to vector<1x128xf32>
    %40 = arith.divf %38, %39 : vector<1x128xf32>
    %41 = arith.mulf %34, %34 : vector<8x128xf32>
    %cst_21 = arith.constant dense<0.000000e+00> : vector<128xf32>
    %42 = vector.multi_reduction <add>, %41, %cst_21 [0] : vector<8x128xf32> to vector<128xf32>
    %43 = vector.shape_cast %42 : vector<128xf32> to vector<1x128xf32>
    %cst_22 = arith.constant 8.000000e+00 : f32
    %44 = vector.broadcast %cst_22 : f32 to vector<1x128xf32>
    %45 = arith.divf %43, %44 : vector<1x128xf32>
    %46 = arith.mulf %40, %40 : vector<1x128xf32>
    %47 = arith.subf %45, %46 : vector<1x128xf32>
    %cst_23 = arith.constant 0.000000e+00 : f32
    %48 = vector.broadcast %cst_23 : f32 to vector<1x128xf32>
    %49 = arith.maximumf %47, %48 : vector<1x128xf32>
    %cst_24 = arith.constant 9.99999974E-6 : f32
    %50 = vector.broadcast %cst_24 : f32 to vector<1x128xf32>
    %51 = arith.addf %49, %50 : vector<1x128xf32>
    %52 = math.rsqrt %51 : vector<1x128xf32>
    %53 = arith.mulf %35, %52 : vector<1x128xf32>
    %54 = arith.mulf %40, %53 : vector<1x128xf32>
    %55 = arith.subf %36, %54 : vector<1x128xf32>
    %56 = vector.broadcast %53 : vector<1x128xf32> to vector<8x128xf32>
    %57 = arith.mulf %34, %56 : vector<8x128xf32>
    %58 = vector.broadcast %55 : vector<1x128xf32> to vector<8x128xf32>
    %59 = arith.addf %57, %58 : vector<8x128xf32>
    %cst_25 = arith.constant 0.000000e+00 : f32
    %60 = vector.broadcast %cst_25 : f32 to vector<8x128xf32>
    %61 = arith.maximumf %59, %60 : vector<8x128xf32>
    %c4 = arith.constant 4 : index
    %c0_26 = arith.constant 0 : index
    %62 = vector.load %arg3[%c4, %c0_26] : memref<5x128xf32, #tpu.memory_space<vmem>>, vector<1x128xf32>
    %63 = arith.truncf %61 : vector<8x128xf32> to vector<8x128xbf16>
    %c1_27 = arith.constant 1 : index
    %c0_28 = arith.constant 0 : index
    %c0_29 = arith.constant 0 : index
    %64 = vector.load %arg2[%c1_27, %c0_28, %c0_29] : memref<2x128x128xbf16, #tpu.memory_space<vmem>>, vector<1x128x128xbf16>
    %65 = vector.shape_cast %64 : vector<1x128x128xbf16> to vector<128x128xbf16>
    %cst_30 = arith.constant dense<0.000000e+00> : vector<8x128xf32>
    %66 = tpu.matmul %63, %65, %cst_30 {dimension_numbers = #tpu.dot_dimension_numbers<[1], [0], [0], [1], [0, 0, 1, 1], [], []>} : vector<8x128xbf16>, vector<128x128xbf16>, vector<8x128xf32> -> vector<8x128xf32>
    %67 = vector.broadcast %62 : vector<1x128xf32> to vector<8x128xf32>
    %68 = arith.addf %66, %67 : vector<8x128xf32>
    %c0_31 = arith.constant 0 : index
    %c0_32 = arith.constant 0 : index
    %69 = vector.load %arg4[%c0_31, %c0_32] : memref<8x128xf32, #tpu.memory_space<vmem>>, vector<8x128xf32>
    tpu.vector_store %arg4[%c0_31, %c0_32], %68 {strides = array<i32>} : memref<8x128xf32, #tpu.memory_space<vmem>>, vector<8x128xf32>,
    return
  }
}

</mosaic_0001>

<llo_original>
// kernel: tpu_custom_call.1
$region0: #{tpu_custom_call.1}
  #allocation0 [shape = 'u32[]', space=smem, size = 0x4, offset = 0x4, fixed_abs, tag = 'smem constant byte address 0x4 - core index']
  #allocation1 [shape = 'u32[144,128]{1,0:T(1,128)}', space=vmem, size = 0x12000, scoped, tag = 'internal scratch']
  %s0 = inlined_call_operand.hbm [shape: f32[8,32], index: 0, kind: input, shape index: {}]
  %s1 = inlined_call_operand.hbm [shape: bf16[32,128], index: 1, kind: input, shape index: {}]
  %s2 = inlined_call_operand.hbm [shape: bf16[2,128,128], index: 2, kind: input, shape index: {}]
  %s3 = inlined_call_operand.vmem [shape: f32[5,128], index: 3, kind: input, shape index: {}]
  %s4 = inlined_call_operand.hbm [shape: f32[8,128], index: 4, kind: output, shape index: {}]
  %s5 = sld [smem:[#allocation0]]
  $region38: #{tpu_custom_call.1} parent=0
    _
  %s7 = ssub.s32 1, %s5
  %s8 = scalar_select 0, %s7, %s5
  $region1: #{tpu_custom_call.1} parent=0
    #allocation2 [shape = 'u8[4096]{0}', space=vmem, size = 0x1000, scoped, tag = 'input window, operand 0, single buffered']
    #allocation3 [shape = 's32[1]{0}', space=sflag, size = 0x4, scoped, tag = 'scoped memory for tpu_custom_call.1']
    #allocation4 [shape = 's32[1]{0}', space=sflag, size = 0x4, scoped, tag = 'scoped memory for tpu_custom_call.1']
    #allocation5 [shape = 'u8[8192]{0}', space=vmem, size = 0x2000, scoped, tag = 'input window, operand 1, single buffered']
    #allocation6 [shape = 's32[1]{0}', space=sflag, size = 0x4, scoped, tag = 'scoped memory for tpu_custom_call.1']
    #allocation7 [shape = 'u8[65536]{0}', space=vmem, size = 0x10000, scoped, tag = 'input window, operand 2, single buffered']
    #allocation8 [shape = 'u8[4096]{0}', space=vmem, size = 0x1000, scoped, tag = 'output window, operand 0, single buffered']
    %9 = vsyncpa [#allocation3], 0
    %10 = vsyncpa [#allocation6], 0
    %11 = vsyncpa [#allocation4], 0
    // Predicated region
    $region2: #{tpu_custom_call.1} parent=1 // pred_check
      _
    $region3: #{tpu_custom_call.1} parent=1 // pred_check_branch
      %13 = sbr.rel (0) target = $region5
    $region4: #{tpu_custom_call.1} parent=1 // pred_region
      %s15 = ssub.s32 128, 128
      %16 = vsyncadd [#allocation3], %s15
      %s18 = sshll.u32 [#allocation2], 4
      %s19 = int_to_ptr.vmem [resolvable:$true] %s18
      %21 = dma.hbm_to_vmem [thread:$0]  %s0, 128, %s19, [#allocation3]
    $region5: #{tpu_custom_call.1} parent=1 // pred_fallthru
      _
    // Predicated region
    $region6: #{tpu_custom_call.1} parent=1 // pred_check
      _
    $region7: #{tpu_custom_call.1} parent=1 // pred_check_branch
      %23 = sbr.rel (0) target = $region9
    $region8: #{tpu_custom_call.1} parent=1 // pred_region
      %s25 = ssub.s32 256, 256
      %26 = vsyncadd [#allocation6], %s25
      %s27 = sshll.u32 [#allocation5], 4
      %s28 = int_to_ptr.vmem [resolvable:$true] %s27
      %33 = dma.hbm_to_vmem [thread:$0]  %s1, 256, %s28, [#allocation6], 64, 64, 4
    $region9: #{tpu_custom_call.1} parent=1 // pred_fallthru
      _
    // Predicated region
    $region10: #{tpu_custom_call.1} parent=1 // pred_check
      _
    $region11: #{tpu_custom_call.1} parent=1 // pred_check_branch
      %35 = sbr.rel (0) target = $region13
    $region12: #{tpu_custom_call.1} parent=1 // pred_region
      %s37 = ssub.s32 2048, 2048
      %38 = vsyncadd [#allocation6], %s37
      %s39 = sshll.u32 [#allocation7], 4
      %s40 = int_to_ptr.vmem [resolvable:$true] %s39
      %45 = dma.hbm_to_vmem [thread:$0]  %s2, 2048, %s40, [#allocation6], 64, 64, 4
    $region13: #{tpu_custom_call.1} parent=1 // pred_fallthru
      _
    // Predicated region
    $region14: #{tpu_custom_call.1} parent=1 // pred_check
      _
    $region15: #{tpu_custom_call.1} parent=1 // pred_check_branch
      %47 = sbr.rel (0) target = $region17
    $region16: #{tpu_custom_call.1} parent=1 // pred_region
      _
    $region17: #{tpu_custom_call.1} parent=1 // pred_fallthru
      _
    // Predicated region
    $region18: #{tpu_custom_call.1} parent=1 // pred_check
      _
    $region19: #{tpu_custom_call.1} parent=1 // pred_check_branch
      %49 = sbr.rel (0) target = $region21
    $region20: #{tpu_custom_call.1} parent=1 // pred_region
      %50 = dma.done [#allocation3], 128
    $region21: #{tpu_custom_call.1} parent=1 // pred_fallthru
      _
    // Predicated region
    $region22: #{tpu_custom_call.1} parent=1 // pred_check
      _
    $region23: #{tpu_custom_call.1} parent=1 // pred_check_branch
      %52 = sbr.rel (0) target = $region25
    $region24: #{tpu_custom_call.1} parent=1 // pred_region
      %53 = dma.done [#allocation6], 256
    $region25: #{tpu_custom_call.1} parent=1 // pred_fallthru
      _
    // Predicated region
    $region26: #{tpu_custom_call.1} parent=1 // pred_check
      _
    $region27: #{tpu_custom_call.1} parent=1 // pred_check_branch
      %55 = sbr.rel (0) target = $region29
    $region28: #{tpu_custom_call.1} parent=1 // pred_region
      %56 = dma.done [#allocation6], 2048
    $region29: #{tpu_custom_call.1} parent=1 // pred_fallthru
      _
    %v58 = vld [vmem:[#allocation2] sm:$0xff]
    %v59 = vld [vmem:[#allocation5] sm:$0xf]
    %v60 = vld [vmem:[#allocation5 + $0x4] sm:$0xf]
    %v61 = vld [vmem:[#allocation5 + $0x8] sm:$0xf]
    %v62 = vld [vmem:[#allocation5 + $0xc] sm:$0xf]
    %v63 = vpack.c.bf16 %v58, %v58
    %v68 = vunpack.c.l.b16 %v59
    %v69 = vunpack.c.l.b16 %v60
    %v70 = vunpack.c.l.b16 %v61
    %v71 = vunpack.c.l.b16 %v62
    %v72 = vpack.c.b16 %v69, %v68
    %v73 = vpack.c.b16 %v71, %v70
    %vm76 = vcmask 261120
    %v78 = vsel %vm76, %v63, 0
    %80 = vmatprep.subr.bf16.mxu0 0
    %81 = vmatpush1.bf16.msra.mxu0 %v72
    %82 = vmatprep.subr.bf16.mxu0 0
    %83 = vmatpush1.bf16.msra.mxu0 %v73
    %84 = vmatprep.subr.bf16.mxu0 0
    %85 = vmatpush1.bf16.msra.mxu0 0
    %86 = vmatprep.subr.bf16.mxu0 0
    %87 = vmatpush1.bf16.msra.mxu0 0
    %88 = vmatprep.subr.bf16.mxu0 0
    %89 = vmatpush1.bf16.msra.mxu0 0
    %90 = vmatprep.subr.bf16.mxu0 0
    %91 = vmatpush1.bf16.msra.mxu0 0
    %92 = vmatprep.subr.bf16.mxu0 0
    %93 = vmatpush1.bf16.msra.mxu0 0
    %94 = vmatprep.subr.bf16.mxu0 0
    %95 = vmatpush1.bf16.msra.mxu0 0
    %96 = vmatprep.subr.bf16.mxu0 0
    %97 = vmatpush1.bf16.msra.mxu0 0
    %98 = vmatprep.subr.bf16.mxu0 0
    %99 = vmatpush1.bf16.msra.mxu0 0
    %100 = vmatprep.subr.bf16.mxu0 0
    %101 = vmatpush1.bf16.msra.mxu0 0
    %102 = vmatprep.subr.bf16.mxu0 0
    %103 = vmatpush1.bf16.msra.mxu0 0
    %104 = vmatprep.subr.bf16.mxu0 0
    %105 = vmatpush1.bf16.msra.mxu0 0
    %106 = vmatprep.subr.bf16.mxu0 0
    %107 = vmatpush1.bf16.msra.mxu0 0
    %108 = vmatprep.subr.bf16.mxu0 0
    %109 = vmatpush1.bf16.msra.mxu0 0
    %110 = vmatprep.subr.bf16.mxu0 0
    %111 = vmatpush1.bf16.msra.mxu0 0
    %112 = vmatprep.mubr.bf16.mxu0 0
    %113 = vmatmul.mubr.bf16.gmra.mrb[0].mxu0 %v78
    %v114 = vpop.f32.mrb[0].mxu0
    %v115 = vadd.f32 0.0, %v114
    %v116 = vpop.f32.mrb[0].mxu0
    %v117 = vpop.f32.mrb[0].mxu0
    %v118 = vpop.f32.mrb[0].mxu0
    %119 = vdwg.mxu0
    %v120 = vld [vmem:[%s3] sm:$0x1]
    %v121 = vld [vmem:[%s3 + $0x1] sm:$0x1]
    %v122 = vrot.slane %v115, 4
    %v123 = vadd.f32 %v115, %v122
    %v124 = vrot.slane %v123, 2
    %v125 = vadd.f32 %v123, %v124
    %v126 = vrot.slane %v125, 1
    %v127 = vadd.f32 %v125, %v126
    %v128 = vrcp.pop 8.0
    %v129 = vmul.f32 %v127, %v128
    %v130 = vmul.f32 %v115, %v115
    %v131 = vrot.slane %v130, 4
    %v132 = vadd.f32 %v130, %v131
    %v133 = vrot.slane %v132, 2
    %v134 = vadd.f32 %v132, %v133
    %v135 = vrot.slane %v134, 1
    %v136 = vadd.f32 %v134, %v135
    %v137 = vmul.f32 %v136, %v128
    %v138 = vmul.f32 %v129, %v129
    %v139 = vsub.f32 %v137, %v138
    %v140 = vmax.f32 %v139, 0.0
    %v141 = vadd.f32 %v140, 1e-05
    %v142 = vrsqrt.pop %v141
    %v143 = vmul.f32 %v120, %v142
    %v144 = vmul.f32 %v129, %v143
    %v145 = vsub.f32 %v121, %v144
    %v146 = vlaneseq
    %v147 = vshrl.u32 %v146, 7
    %v148 = vsub.s32 0, %v147
    %v149 = vrot.slane %v143, %v148
    %v150 = vmul.f32 %v115, %v149
    %v151 = vlaneseq
    %v152 = vshrl.u32 %v151, 7
    %v153 = vsub.s32 0, %v152
    %v154 = vrot.slane %v145, %v153
    %v155 = vadd.f32 %v150, %v154
    %v156 = vmax.f32 %v155, 0.0
    %v157 = vld [vmem:[#allocation7] sm:$0xf]
    %v158 = vld [vmem:[#allocation7 + $0x4] sm:$0xf]
    %v159 = vld [vmem:[#allocation7 + $0x8] sm:$0xf]
    %v160 = vld [vmem:[#allocation7 + $0xc] sm:$0xf]
    %v161 = vld [vmem:[#allocation7 + $0x10] sm:$0xf]
    %v162 = vld [vmem:[#allocation7 + $0x14] sm:$0xf]
    %v163 = vld [vmem:[#allocation7 + $0x18] sm:$0xf]
    %v164 = vld [vmem:[#allocation7 + $0x1c] sm:$0xf]
    %v165 = vld [vmem:[#allocation7 + $0x20] sm:$0xf]
    %v166 = vld [vmem:[#allocation7 + $0x24] sm:$0xf]
    %v167 = vld [vmem:[#allocation7 + $0x28] sm:$0xf]
    %v168 = vld [vmem:[#allocation7 + $0x2c] sm:$0xf]
    %v169 = vld [vmem:[#allocation7 + $0x30] sm:$0xf]
    %v170 = vld [vmem:[#allocation7 + $0x34] sm:$0xf]
    %v171 = vld [vmem:[#allocation7 + $0x38] sm:$0xf]
    %v172 = vld [vmem:[#allocation7 + $0x3c] sm:$0xf]
    %v173 = vpack.c.bf16 %v156, %v156
    %v190 = vunpack.c.l.b16 %v157
    %v191 = vunpack.c.l.b16 %v158
    %v192 = vunpack.c.l.b16 %v159
    %v193 = vunpack.c.l.b16 %v160
    %v194 = vunpack.c.l.b16 %v161
    %v195 = vunpack.c.l.b16 %v162
    %v196 = vunpack.c.l.b16 %v163
    %v197 = vunpack.c.l.b16 %v164
    %v198 = vunpack.c.l.b16 %v165
    %v199 = vunpack.c.l.b16 %v166
    %v200 = vunpack.c.l.b16 %v167
    %v201 = vunpack.c.l.b16 %v168
    %v202 = vunpack.c.l.b16 %v169
    %v203 = vunpack.c.l.b16 %v170
    %v204 = vunpack.c.l.b16 %v171
    %v205 = vunpack.c.l.b16 %v172
    %v206 = vpack.c.b16 %v191, %v190
    %v207 = vpack.c.b16 %v193, %v192
    %v208 = vpack.c.b16 %v195, %v194
    %v209 = vpack.c.b16 %v197, %v196
    %v210 = vpack.c.b16 %v199, %v198
    %v211 = vpack.c.b16 %v201, %v200
    %v212 = vpack.c.b16 %v203, %v202
    %v213 = vpack.c.b16 %v205, %v204
    %222 = vmatprep.subr.bf16.mxu0 0
    %223 = vmatpush1.bf16.msra.mxu0 %v206
    %224 = vmatprep.subr.bf16.mxu0 0
    %225 = vmatpush1.bf16.msra.mxu0 %v207
    %226 = vmatprep.subr.bf16.mxu0 0
    %227 = vmatpush1.bf16.msra.mxu0 %v208
    %228 = vmatprep.subr.bf16.mxu0 0
    %229 = vmatpush1.bf16.msra.mxu0 %v209
    %230 = vmatprep.subr.bf16.mxu0 0
    %231 = vmatpush1.bf16.msra.mxu0 %v210
    %232 = vmatprep.subr.bf16.mxu0 0
    %233 = vmatpush1.bf16.msra.mxu0 %v211
    %234 = vmatprep.subr.bf16.mxu0 0
    %235 = vmatpush1.bf16.msra.mxu0 %v212
    %236 = vmatprep.subr.bf16.mxu0 0
    %237 = vmatpush1.bf16.msra.mxu0 %v213
    %238 = vmatprep.subr.bf16.mxu0 0
    %239 = vmatpush1.bf16.msra.mxu0 0
    %240 = vmatprep.subr.bf16.mxu0 0
    %241 = vmatpush1.bf16.msra.mxu0 0
    %242 = vmatprep.subr.bf16.mxu0 0
    %243 = vmatpush1.bf16.msra.mxu0 0
    %244 = vmatprep.subr.bf16.mxu0 0
    %245 = vmatpush1.bf16.msra.mxu0 0
    %246 = vmatprep.subr.bf16.mxu0 0
    %247 = vmatpush1.bf16.msra.mxu0 0
    %248 = vmatprep.subr.bf16.mxu0 0
    %249 = vmatpush1.bf16.msra.mxu0 0
    %250 = vmatprep.subr.bf16.mxu0 0
    %251 = vmatpush1.bf16.msra.mxu0 0
    %252 = vmatprep.subr.bf16.mxu0 0
    %253 = vmatpush1.bf16.msra.mxu0 0
    %254 = vmatprep.mubr.bf16.mxu0 0
    %255 = vmatmul.mubr.bf16.gmra.mrb[0].mxu0 %v173
    %v256 = vpop.f32.mrb[0].mxu0
    %v257 = vadd.f32 0.0, %v256
    %v258 = vpop.f32.mrb[0].mxu0
    %v259 = vpop.f32.mrb[0].mxu0
    %v260 = vpop.f32.mrb[0].mxu0
    %261 = vdwg.mxu0
    %v262 = vld [vmem:[%s3 + $0x2] sm:$0x1]
    %v263 = vld [vmem:[%s3 + $0x3] sm:$0x1]
    %v264 = vrot.slane %v257, 4
    %v265 = vadd.f32 %v257, %v264
    %v266 = vrot.slane %v265, 2
    %v267 = vadd.f32 %v265, %v266
    %v268 = vrot.slane %v267, 1
    %v269 = vadd.f32 %v267, %v268
    %v270 = vmul.f32 %v269, %v128
    %v271 = vmul.f32 %v257, %v257
    %v272 = vrot.slane %v271, 4
    %v273 = vadd.f32 %v271, %v272
    %v274 = vrot.slane %v273, 2
    %v275 = vadd.f32 %v273, %v274
    %v276 = vrot.slane %v275, 1
    %v277 = vadd.f32 %v275, %v276
    %v278 = vmul.f32 %v277, %v128
    %v279 = vmul.f32 %v270, %v270
    %v280 = vsub.f32 %v278, %v279
    %v281 = vmax.f32 %v280, 0.0
    %v282 = vadd.f32 %v281, 1e-05
    %v283 = vrsqrt.pop %v282
    %v284 = vmul.f32 %v262, %v283
    %v285 = vmul.f32 %v270, %v284
    %v286 = vsub.f32 %v263, %v285
    %v287 = vlaneseq
    %v288 = vshrl.u32 %v287, 7
    %v289 = vsub.s32 0, %v288
    %v290 = vrot.slane %v284, %v289
    %v291 = vmul.f32 %v257, %v290
    %v292 = vlaneseq
    %v293 = vshrl.u32 %v292, 7
    %v294 = vsub.s32 0, %v293
    %v295 = vrot.slane %v286, %v294
    %v296 = vadd.f32 %v291, %v295
    %v297 = vmax.f32 %v296, 0.0
    %v298 = vld [vmem:[%s3 + $0x4] sm:$0x1]
    %v299 = vpack.c.bf16 %v297, %v297
    %s300 = scalar_lea.vmem [#allocation7], 64
    %v301 = vld [vmem:[%s300] sm:$0xf]
    %v302 = vld [vmem:[%s300 + $0x4] sm:$0xf]
    %v303 = vld [vmem:[%s300 + $0x8] sm:$0xf]
    %v304 = vld [vmem:[%s300 + $0xc] sm:$0xf]
    %v305 = vld [vmem:[%s300 + $0x10] sm:$0xf]
    %v306 = vld [vmem:[%s300 + $0x14] sm:$0xf]
    %v307 = vld [vmem:[%s300 + $0x18] sm:$0xf]
    %v308 = vld [vmem:[%s300 + $0x1c] sm:$0xf]
    %v309 = vld [vmem:[%s300 + $0x20] sm:$0xf]
    %v310 = vld [vmem:[%s300 + $0x24] sm:$0xf]
    %v311 = vld [vmem:[%s300 + $0x28] sm:$0xf]
    %v312 = vld [vmem:[%s300 + $0x2c] sm:$0xf]
    %v313 = vld [vmem:[%s300 + $0x30] sm:$0xf]
    %v314 = vld [vmem:[%s300 + $0x34] sm:$0xf]
    %v315 = vld [vmem:[%s300 + $0x38] sm:$0xf]
    %v316 = vld [vmem:[%s300 + $0x3c] sm:$0xf]
    %v317 = vlaneseq
    %v318 = vshrl.u32 %v317, 7
    %v319 = vsub.s32 0, %v318
    %v320 = vrot.slane %v298, %v319
    %v337 = vunpack.c.l.b16 %v301
    %v338 = vunpack.c.l.b16 %v302
    %v339 = vunpack.c.l.b16 %v303
    %v340 = vunpack.c.l.b16 %v304
    %v341 = vunpack.c.l.b16 %v305
    %v342 = vunpack.c.l.b16 %v306
    %v343 = vunpack.c.l.b16 %v307
    %v344 = vunpack.c.l.b16 %v308
    %v345 = vunpack.c.l.b16 %v309
    %v346 = vunpack.c.l.b16 %v310
    %v347 = vunpack.c.l.b16 %v311
    %v348 = vunpack.c.l.b16 %v312
    %v349 = vunpack.c.l.b16 %v313
    %v350 = vunpack.c.l.b16 %v314
    %v351 = vunpack.c.l.b16 %v315
    %v352 = vunpack.c.l.b16 %v316
    %v353 = vpack.c.b16 %v338, %v337
    %v354 = vpack.c.b16 %v340, %v339
    %v355 = vpack.c.b16 %v342, %v341
    %v356 = vpack.c.b16 %v344, %v343
    %v357 = vpack.c.b16 %v346, %v345
    %v358 = vpack.c.b16 %v348, %v347
    %v359 = vpack.c.b16 %v350, %v349
    %v360 = vpack.c.b16 %v352, %v351
    %369 = vmatprep.subr.bf16.mxu0 0
    %370 = vmatpush1.bf16.msra.mxu0 %v353
    %371 = vmatprep.subr.bf16.mxu0 0
    %372 = vmatpush1.bf16.msra.mxu0 %v354
    %373 = vmatprep.subr.bf16.mxu0 0
    %374 = vmatpush1.bf16.msra.mxu0 %v355
    %375 = vmatprep.subr.bf16.mxu0 0
    %376 = vmatpush1.bf16.msra.mxu0 %v356
    %377 = vmatprep.subr.bf16.mxu0 0
    %378 = vmatpush1.bf16.msra.mxu0 %v357
    %379 = vmatprep.subr.bf16.mxu0 0
    %380 = vmatpush1.bf16.msra.mxu0 %v358
    %381 = vmatprep.subr.bf16.mxu0 0
    %382 = vmatpush1.bf16.msra.mxu0 %v359
    %383 = vmatprep.subr.bf16.mxu0 0
    %384 = vmatpush1.bf16.msra.mxu0 %v360
    %385 = vmatprep.subr.bf16.mxu0 0
    %386 = vmatpush1.bf16.msra.mxu0 0
    %387 = vmatprep.subr.bf16.mxu0 0
    %388 = vmatpush1.bf16.msra.mxu0 0
    %389 = vmatprep.subr.bf16.mxu0 0
    %390 = vmatpush1.bf16.msra.mxu0 0
    %391 = vmatprep.subr.bf16.mxu0 0
    %392 = vmatpush1.bf16.msra.mxu0 0
    %393 = vmatprep.subr.bf16.mxu0 0
    %394 = vmatpush1.bf16.msra.mxu0 0
    %395 = vmatprep.subr.bf16.mxu0 0
    %396 = vmatpush1.bf16.msra.mxu0 0
    %397 = vmatprep.subr.bf16.mxu0 0
    %398 = vmatpush1.bf16.msra.mxu0 0
    %399 = vmatprep.subr.bf16.mxu0 0
    %400 = vmatpush1.bf16.msra.mxu0 0
    %401 = vmatprep.mubr.bf16.mxu0 0
    %402 = vmatmul.mubr.bf16.gmra.mrb[0].mxu0 %v299
    %v403 = vpop.f32.mrb[0].mxu0
    %v404 = vadd.f32 %v320, %v403
    %v405 = vpop.f32.mrb[0].mxu0
    %v406 = vpop.f32.mrb[0].mxu0
    %v407 = vpop.f32.mrb[0].mxu0
    %408 = vdwg.mxu0
    %409 = vst [vmem:[#allocation8] sm:$0xff] %v404
    // Predicated region
    $region30: #{tpu_custom_call.1} parent=1 // pred_check
      _
    $region31: #{tpu_custom_call.1} parent=1 // pred_check_branch
      %411 = sbr.rel (0) target = $region33
    $region32: #{tpu_custom_call.1} parent=1 // pred_region
      %s413 = ssub.s32 128, 128
      %414 = vsyncadd [#allocation4], %s413
      %s416 = sshll.u32 [#allocation8], 4
      %s417 = int_to_ptr.vmem [resolvable:$true] %s416
      %419 = dma.vmem_to_hbm [thread:$0]  %s417, 128, %s4, [#allocation4]
    $region33: #{tpu_custom_call.1} parent=1 // pred_fallthru
      _
    // Predicated region
    $region34: #{tpu_custom_call.1} parent=1 // pred_check
      _
    $region35: #{tpu_custom_call.1} parent=1 // pred_check_branch
      %421 = sbr.rel (0) target = $region37
    $region36: #{tpu_custom_call.1} parent=1 // pred_region
      %422 = dma.done [#allocation4], 128
    $region37: #{tpu_custom_call.1} parent=1 // pred_fallthru
      _
    %423 = vsyncpa [#allocation3], 1
    %424 = vsyncpa [#allocation6], 1
    %425 = vsyncpa [#allocation4], 1

</llo_original>
